<compile_context>
chip_gen: v7x
topology: tpu7x:2x2x1
jax: 0.10.0
libtpu: 0.0.40
codegen_flags: <defaults>
</compile_context>

<pallas_src>
import functools

import jax
import jax.numpy as jnp
from jax.experimental import pallas as pl
from jax.experimental.pallas import tpu as pltpu


_LANE = 128
_MAX_TILE = 1024          # G row/K tile target: 1024x1024 bf16 = 2 MiB per buffer


# ------------------------------ planning helpers ------------------------------
def _round_up(n, m):
    return ((n + m - 1) // m) * m


def _vmem_limit_bytes():
    """Generation-dependent VMEM budget with headroom for compiler scratch."""
    cap = None
    try:
        cap = getattr(pltpu.get_tpu_info(), "vmem_capacity_bytes", None)
    except Exception:
        cap = None
    if not cap:
        cap = 64 * 1024 * 1024            # conservative default (v7x per-TC)
    limit = int(cap * 0.75)               # ~96 MiB on v5e/v6e, ~48 MiB on v7x
    return max(32 * 1024 * 1024, min(limit, 100 * 1024 * 1024))


def plan_tiles(n_nodes, max_tile=_MAX_TILE):
    """Fixed (8,128)/MXU-friendly tile; N is zero-padded to a tile multiple."""
    tile = min(_round_up(n_nodes, _LANE), max_tile)
    n_pad = _round_up(n_nodes, tile)
    return n_pad, tile, tile


def _xw_resident_ok(n_pad, hp, vmem_limit):
    """Keep the full XW matrix resident if it (double-buffered) plus G tiles,
    accumulator, W_next and output tiles comfortably fit under the budget."""
    xw_bytes = n_pad * hp * 2             # bf16
    fixed = 8 * 1024 * 1024               # G tiles x2, acc, out tiles, W_next, slack
    return 2 * xw_bytes + fixed <= int(vmem_limit * 0.75)


# ----------------------------- Pallas kernel 1 --------------------------------
def _xw_kernel(x_ref, w_ref, o_ref):
    """XW = X @ W for layer 0 only (Fin != Hp, cannot be epilogue-fused)."""
    o_ref[...] = jnp.dot(
        x_ref[...], w_ref[...], preferred_element_type=jnp.float32
    ).astype(o_ref.dtype)


def xw_matmul(X, W, *, row_tile, vmem_limit):
    n_pad, fin = X.shape
    hp = W.shape[1]
    return pl.pallas_call(
        _xw_kernel,
        out_shape=jax.ShapeDtypeStruct((n_pad, hp), jnp.bfloat16),
        grid_spec=pltpu.PrefetchScalarGridSpec(
            num_scalar_prefetch=0,
            grid=(n_pad // row_tile,),
            in_specs=[
                pl.BlockSpec((row_tile, fin), lambda i: (i, 0)),  # X row-tile
                pl.BlockSpec((fin, hp), lambda i: (0, 0)),        # W (resident)
            ],
            out_specs=pl.BlockSpec((row_tile, hp), lambda i: (i, 0)),
        ),
        compiler_params=pltpu.CompilerParams(
            dimension_semantics=("parallel",),
            vmem_limit_bytes=vmem_limit,
        ),
    )(X, W)


# ----------------------------- Pallas kernel 2 --------------------------------
def _prop_kernel(*refs, activation, valid_cols, k_tile, xw_resident, fuse_next):
    """o = [act(G @ XW + b)] (@ W_next if fused), tiled over (rows, K cols of G).

    refs (in order):
      g_ref      : (TN, TK)       bf16 tile of the propagation matrix
      xw_ref     : (Np, Hp) or (TK, Hp)  bf16 XW (resident or streamed slab)
      b_ref      : (1, Hp)        f32 bias (lane-padded)
      w_next_ref : (Hp, Hn)       bf16 next-layer weight (only if fuse_next)
      o_ref      : (TN, Hn/Hp)    output row-tile (bf16 hidden / f32 final)
      acc_ref    : (TN, Hp)       f32 accumulator scratch
    """
    if fuse_next:
        g_ref, xw_ref, b_ref, w_next_ref, o_ref, acc_ref = refs
    else:
        g_ref, xw_ref, b_ref, o_ref, acc_ref = refs
        w_next_ref = None

    k = pl.program_id(1)

    @pl.when(k == 0)
    def _():
        acc_ref[...] = jnp.zeros_like(acc_ref)

    if xw_resident:
        off = pl.multiple_of(k * k_tile, k_tile)
        xw = xw_ref[pl.ds(off, k_tile), :]
    else:
        xw = xw_ref[...]
    acc_ref[...] += jnp.dot(g_ref[...], xw, preferred_element_type=jnp.float32)

    @pl.when(k == pl.num_programs(1) - 1)
    def _():
        y = acc_ref[...] + b_ref[...]
        if activation == "relu":
            y = jnp.maximum(y, 0.0)
        elif activation == "log_softmax":
            # log_softmax over the class dim (row-local, safe under row tiling);
            # padded lanes are excluded from the reduction (f32 output only).
            col = jax.lax.broadcasted_iota(jnp.int32, y.shape, 1)
            y = jnp.where(col < valid_cols, y, -1e30)
            m = jnp.max(y, axis=1, keepdims=True)
            z = y - m
            lse = jnp.log(jnp.sum(jnp.exp(z), axis=1, keepdims=True))
            y = z - lse
        if fuse_next:
            # next layer's X @ W, hidden under G DMA (kernel is mem-bound on G)
            y = jnp.dot(y.astype(jnp.bfloat16), w_next_ref[...],
                        preferred_element_type=jnp.float32)
        o_ref[...] = y.astype(o_ref.dtype)


def hgnn_propagate(Gp, XW, b, W_next, *, activation, valid_cols, out_dtype,
                   row_tile, k_tile, xw_resident, vmem_limit):
    n_pad = Gp.shape[0]
    hp = XW.shape[1]
    fuse_next = W_next is not None
    out_cols = W_next.shape[1] if fuse_next else hp

    in_specs = [pl.BlockSpec((row_tile, k_tile), lambda i, k: (i, k))]   # G tile
    args = [Gp, XW, b]
    if xw_resident:
        # constant block index -> fetched once, stays resident across the grid
        in_specs.append(pl.BlockSpec((n_pad, hp), lambda i, k: (0, 0)))
    else:
        in_specs.append(pl.BlockSpec((k_tile, hp), lambda i, k: (k, 0)))  # XW slab
    in_specs.append(pl.BlockSpec((1, hp), lambda i, k: (0, 0)))           # bias
    if fuse_next:
        in_specs.append(pl.BlockSpec((hp, out_cols), lambda i, k: (0, 0)))  # W_next
        args.append(W_next)

    kernel = functools.partial(
        _prop_kernel, activation=activation, valid_cols=valid_cols,
        k_tile=k_tile, xw_resident=xw_resident, fuse_next=fuse_next)

    return pl.pallas_call(
        kernel,
        out_shape=jax.ShapeDtypeStruct((n_pad, out_cols), out_dtype),
        grid_spec=pltpu.PrefetchScalarGridSpec(
            num_scalar_prefetch=0,
            grid=(n_pad // row_tile, n_pad // k_tile),   # reduction (K) axis last
            in_specs=in_specs,
            out_specs=pl.BlockSpec((row_tile, out_cols), lambda i, k: (i, 0)),
            scratch_shapes=[pltpu.VMEM((row_tile, hp), jnp.float32)],
        ),
        compiler_params=pltpu.CompilerParams(
            dimension_semantics=("parallel", "arbitrary"),
            vmem_limit_bytes=vmem_limit,
        ),
    )(*args)


# --------------------------- Model construction -----------------------------
def build_propagation_matrix(key, n_nodes, n_edges):
    """Dense HGNN operator G = Dv^{-1/2} H De^{-1} H^T Dv^{-1/2} (We = I)."""
    H = (jax.random.uniform(key, (n_nodes, n_edges)) < 0.3).astype(jnp.float32)
    H = H.at[jnp.arange(n_nodes), jnp.arange(n_nodes) % n_edges].set(1.0)
    Dv = H.sum(axis=1)
    De = H.sum(axis=0)
    dv_inv_sqrt = 1.0 / jnp.sqrt(Dv)
    de_inv = 1.0 / De
    G = (dv_inv_sqrt[:, None] * H) @ (de_inv[:, None] * H.T) * dv_inv_sqrt[None, :]
    return G.astype(jnp.float32)


def glorot(key, shape):
    fan_in, fan_out = shape
    lim = jnp.sqrt(6.0 / (fan_in + fan_out))
    return jax.random.uniform(key, shape, minval=-lim, maxval=lim, dtype=jnp.float32)


def init_params(key, nfeat, nhid, nclass, nlayer, nhead):
    keys = jax.random.split(key, nlayer * 2)
    convs = []
    dims = [(nfeat, nhid * nhead)] + [(nhid * nhead, nhid * nhead)] * (nlayer - 2)
    for li, (din, dout) in enumerate(dims):
        W = glorot(keys[2 * li], (din, dout))
        b = jnp.zeros((dout,), jnp.float32)
        convs.append((W, b))
    W_out = glorot(keys[-1], (nhid * nhead, nclass))
    b_out = jnp.zeros((nclass,), jnp.float32)
    return {"convs": convs, "conv_out": (W_out, b_out)}


def _pad2(W, rows, cols):
    out = jnp.zeros((rows, cols), W.dtype)
    return out.at[: W.shape[0], : W.shape[1]].set(W)


def _pad1(b, n):
    out = jnp.zeros((n,), b.dtype)
    return out.at[: b.shape[0]].set(b)


def _pad_rows(A, n_pad):
    if A.shape[0] == n_pad:
        return A
    out = jnp.zeros((n_pad,) + A.shape[1:], A.dtype)
    return out.at[: A.shape[0]].set(A)


def pad_params(params, nfeat, hid, nclass):
    """One-time setup: zero-pad hidden/class dims to 128-lane multiples and
    pre-cast (W -> bf16, b -> f32 row vector).  Padded entries are zero, so
    valid activation columns are bit-identical to the unpadded computation."""
    hp = _round_up(hid, _LANE)
    cp = _round_up(nclass, _LANE)
    convs_p = []
    for li, (W, b) in enumerate(params["convs"]):
        in_dim = nfeat if li == 0 else hp
        convs_p.append((_pad2(W, in_dim, hp).astype(jnp.bfloat16),
                        _pad1(b, hp).reshape(1, -1).astype(jnp.float32)))
    W, b = params["conv_out"]
    return {"convs": convs_p,
            "conv_out": (_pad2(W, hp, cp).astype(jnp.bfloat16),
                         _pad1(b, cp).reshape(1, -1).astype(jnp.float32))}


def prepare_graph(G, n_pad):
    """One-time setup: pad G to (n_pad, n_pad) and cast to bf16 (hoisted out
    of the per-forward path; this was ~25-30% of wall time before)."""
    n = G.shape[0]
    Gp = G if n == n_pad else jnp.zeros((n_pad, n_pad), G.dtype).at[:n, :n].set(G)
    return Gp.astype(jnp.bfloat16)


# ------------------------------- Forward pass --------------------------------
def hgsys_hgnn_forward(X, Gp, padded_params, *, nclass, n_nodes,
                       row_tile, k_tile, vmem_limit):
    n_pad = Gp.shape[0]
    Xb = _pad_rows(X.astype(jnp.bfloat16), n_pad)   # input_drop: identity (eval)

    convs = padded_params["convs"]
    W_out, b_out = padded_params["conv_out"]

    # layer-0 feature transform (Fin != Hp, so it cannot be epilogue-fused)
    W0, _ = convs[0]
    xw = xw_matmul(Xb, W0, row_tile=row_tile, vmem_limit=vmem_limit)

    # hidden layers: relu(G @ XW + b), with the NEXT layer's X @ W fused into
    # the finalize epilogue -> each pallas_call emits the next layer's XW.
    n_conv = len(convs)
    for li in range(n_conv):
        _, b = convs[li]
        W_next = convs[li + 1][0] if li + 1 < n_conv else W_out
        hp = xw.shape[1]
        xw = hgnn_propagate(
            Gp, xw, b, W_next,
            activation="relu", valid_cols=hp,
            out_dtype=jnp.bfloat16, row_tile=row_tile, k_tile=k_tile,
            xw_resident=_xw_resident_ok(n_pad, hp, vmem_limit),
            vmem_limit=vmem_limit)
        # dropout: identity (eval mode)

    # output layer: G @ XW_out + b_out, then masked log_softmax (f32 output)
    cp = xw.shape[1]
    out = hgnn_propagate(
        Gp, xw, b_out, None,
        activation="log_softmax", valid_cols=nclass,
        out_dtype=jnp.float32, row_tile=row_tile, k_tile=k_tile,
        xw_resident=_xw_resident_ok(n_pad, cp, vmem_limit),
        vmem_limit=vmem_limit)
    return out[:n_nodes, :nclass]            # slice off row/lane padding


def reference_forward(X, G, params):
    """Pure-JAX reference with the same storage dtypes (bf16 stream, f32 acc)."""
    Gb = G.astype(jnp.bfloat16)
    h = X.astype(jnp.bfloat16)
    for (W, b) in params["convs"]:
        xw = jnp.dot(h, W.astype(jnp.bfloat16),
                     preferred_element_type=jnp.float32).astype(jnp.bfloat16)
        y = jnp.dot(Gb, xw, preferred_element_type=jnp.float32) + b[None, :]
        h = jnp.maximum(y, 0.0).astype(jnp.bfloat16)
    W, b = params["conv_out"]
    xw = jnp.dot(h, W.astype(jnp.bfloat16),
                 preferred_element_type=jnp.float32).astype(jnp.bfloat16)
    logits = jnp.dot(Gb, xw, preferred_element_type=jnp.float32) + b[None, :]
    return jax.nn.log_softmax(logits, axis=1)


# --------------------------------- Main --------------------------------------
if __name__ == "__main__":
    # Small, module-consistent shapes
    N_NODES, N_EDGES = 64, 32
    NFEAT, NHID, NCLASS, NLAYER, NHEAD = 32, 16, 8, 3, 1

    root = jax.random.PRNGKey(0)
    k_x, k_h, k_p = jax.random.split(root, 3)

    X = jax.random.normal(k_x, (N_NODES, NFEAT), dtype=jnp.float32)
    G = build_propagation_matrix(k_h, N_NODES, N_EDGES)
    params = init_params(k_p, NFEAT, NHID, NCLASS, NLAYER, NHEAD)

    # ---- one-time setup (hoisted out of the per-forward path) ----
    vmem_limit = _vmem_limit_bytes()
    n_pad, row_tile, k_tile = plan_tiles(N_NODES)
    Gp = prepare_graph(G, n_pad)                         # pad + bf16-cast ONCE
    padded_params = pad_params(params, NFEAT, NHID * NHEAD, NCLASS)

    out = hgsys_hgnn_forward(
        X, Gp, padded_params, nclass=NCLASS, n_nodes=N_NODES,
        row_tile=row_tile, k_tile=k_tile, vmem_limit=vmem_limit)
    out = jax.block_until_ready(out)

    ref = reference_forward(X, G, params)
    assert out.shape == (N_NODES, NCLASS)
    assert jnp.allclose(out, ref, atol=2e-2, rtol=2e-2), "mismatch vs reference"
    # rows of log_softmax should sum (in prob space) to 1
    assert jnp.allclose(jnp.exp(out).sum(axis=1), 1.0, atol=1e-3)

    print("KERNEL_OK")
</pallas_src>

<mosaic_0001>
module attributes {stable_mosaic.version = 11 : i64} {
  func.func @_xw_kernel(%arg0: i32, %arg1: memref<128x32xbf16, #tpu.memory_space<vmem>>, %arg2: memref<32x128xbf16, #tpu.memory_space<vmem>>, %arg3: memref<128x128xbf16, #tpu.memory_space<vmem>>) attributes {dimension_semantics = [#tpu.dimension_semantics<parallel>], iteration_bounds = array<i64: 1>, scalar_prefetch = 0 : i64, scratch_operands = 0 : i64, tpu.core_type = #tpu.core_type<tc>, window_params = [{transform_indices = @transform_0, window_bounds = array<i64: 128, 32>}, {pipeline_mode = #tpu.pipeline_mode<synchronous>, transform_indices = @transform_1, window_bounds = array<i64: 32, 128>}, {transform_indices = @transform_2, window_bounds = array<i64: 128, 128>}]} {
    %c0 = arith.constant 0 : index
    %c0_0 = arith.constant 0 : index
    %0 = vector.load %arg1[%c0, %c0_0] : memref<128x32xbf16, #tpu.memory_space<vmem>>, vector<128x32xbf16>
    %c0_1 = arith.constant 0 : index
    %c0_2 = arith.constant 0 : index
    %1 = vector.load %arg2[%c0_1, %c0_2] : memref<32x128xbf16, #tpu.memory_space<vmem>>, vector<32x128xbf16>
    %cst = arith.constant dense<0.000000e+00> : vector<128x128xf32>
    %2 = tpu.matmul %0, %1, %cst {dimension_numbers = #tpu.dot_dimension_numbers<[1], [0], [0], [1], [0, 0, 1, 1], [], []>} : vector<128x32xbf16>, vector<32x128xbf16>, vector<128x128xf32> -> vector<128x128xf32>
    %3 = arith.truncf %2 : vector<128x128xf32> to vector<128x128xbf16>
    %c0_3 = arith.constant 0 : index
    %c0_4 = arith.constant 0 : index
    %4 = vector.load %arg3[%c0_3, %c0_4] : memref<128x128xbf16, #tpu.memory_space<vmem>>, vector<128x128xbf16>
    tpu.vector_store %arg3[%c0_3, %c0_4], %3 {strides = array<i32>} : memref<128x128xbf16, #tpu.memory_space<vmem>>, vector<128x128xbf16>,
    return
  }
  func.func @transform_0(%arg0: i32) -> (i32, i32) {
    %c0_i32 = arith.constant 0 : i32
    %c0_i32_0 = arith.constant 0 : i32
    return %arg0, %c0_i32 : i32, i32
  }
  func.func @transform_1(%arg0: i32) -> (i32, i32) {
    %c0_i32 = arith.constant 0 : i32
    %c0_i32_0 = arith.constant 0 : i32
    %c0_i32_1 = arith.constant 0 : i32
    return %c0_i32, %c0_i32_0 : i32, i32
  }
  func.func @transform_2(%arg0: i32) -> (i32, i32) {
    %c0_i32 = arith.constant 0 : i32
    %c0_i32_0 = arith.constant 0 : i32
    return %arg0, %c0_i32 : i32, i32
  }
}

</mosaic_0001>

<llo_original>
// kernel: tpu_custom_call.1
$region0: #{tpu_custom_call.1}
  #allocation0 [shape = 'u32[]', space=smem, size = 0x4, offset = 0x4, fixed_abs, tag = 'smem constant byte address 0x4 - core index']
  #allocation1 [shape = 'u32[144,128]{1,0:T(1,128)}', space=vmem, size = 0x12000, scoped, tag = 'internal scratch']
  %s0 = inlined_call_operand.vmem [shape: bf16[128,32], index: 0, kind: input, shape index: {}]
  %s1 = inlined_call_operand.vmem [shape: bf16[32,128], index: 1, kind: input, shape index: {}]
  %s2 = inlined_call_operand.hbm [shape: bf16[128,128], index: 2, kind: output, shape index: {}]
  %s3 = sld [smem:[#allocation0]]
  $region18: #{tpu_custom_call.1} parent=0
    _
  %s5 = ssub.s32 1, %s3
  %s6 = scalar_select 0, %s5, %s3
  $region1: #{tpu_custom_call.1} parent=0
    #allocation2 [shape = 'u8[32768]{0}', space=vmem, size = 0x8000, scoped, tag = 'output window, operand 0, single buffered']
    #allocation3 [shape = 's32[1]{0}', space=sflag, size = 0x4, scoped, tag = 'scoped memory for tpu_custom_call.1']
    %7 = vsyncpa [#allocation3], 0
    // Predicated region
    $region2: #{tpu_custom_call.1} parent=1 // pred_check
      _
    $region3: #{tpu_custom_call.1} parent=1 // pred_check_branch
      %9 = sbr.rel (0) target = $region5
    $region4: #{tpu_custom_call.1} parent=1 // pred_region
      _
    $region5: #{tpu_custom_call.1} parent=1 // pred_fallthru
      _
    // Predicated region
    $region6: #{tpu_custom_call.1} parent=1 // pred_check
      _
    $region7: #{tpu_custom_call.1} parent=1 // pred_check_branch
      %11 = sbr.rel (0) target = $region9
    $region8: #{tpu_custom_call.1} parent=1 // pred_region
      _
    $region9: #{tpu_custom_call.1} parent=1 // pred_fallthru
      _
    %v13 = vld [vmem:[%s0] sm:$0xf]
    %v14 = vld [vmem:[%s0 + $0x4] sm:$0xf]
    %v15 = vld [vmem:[%s0 + $0x8] sm:$0xf]
    %v16 = vld [vmem:[%s0 + $0xc] sm:$0xf]
    %v17 = vld [vmem:[%s0 + $0x10] sm:$0xf]
    %v18 = vld [vmem:[%s0 + $0x14] sm:$0xf]
    %v19 = vld [vmem:[%s0 + $0x18] sm:$0xf]
    %v20 = vld [vmem:[%s0 + $0x1c] sm:$0xf]
    %v21 = vld [vmem:[%s0 + $0x20] sm:$0xf]
    %v22 = vld [vmem:[%s0 + $0x24] sm:$0xf]
    %v23 = vld [vmem:[%s0 + $0x28] sm:$0xf]
    %v24 = vld [vmem:[%s0 + $0x2c] sm:$0xf]
    %v25 = vld [vmem:[%s0 + $0x30] sm:$0xf]
    %v26 = vld [vmem:[%s0 + $0x34] sm:$0xf]
    %v27 = vld [vmem:[%s0 + $0x38] sm:$0xf]
    %v28 = vld [vmem:[%s0 + $0x3c] sm:$0xf]
    %v29 = vld [vmem:[%s1] sm:$0xf]
    %v30 = vld [vmem:[%s1 + $0x4] sm:$0xf]
    %v31 = vld [vmem:[%s1 + $0x8] sm:$0xf]
    %v32 = vld [vmem:[%s1 + $0xc] sm:$0xf]
    %v49 = vunpack.c.l.b16 %v13
    %v50 = vunpack.c.l.b16 %v14
    %v51 = vunpack.c.l.b16 %v15
    %v52 = vunpack.c.l.b16 %v16
    %v53 = vunpack.c.l.b16 %v17
    %v54 = vunpack.c.l.b16 %v18
    %v55 = vunpack.c.l.b16 %v19
    %v56 = vunpack.c.l.b16 %v20
    %v57 = vunpack.c.l.b16 %v21
    %v58 = vunpack.c.l.b16 %v22
    %v59 = vunpack.c.l.b16 %v23
    %v60 = vunpack.c.l.b16 %v24
    %v61 = vunpack.c.l.b16 %v25
    %v62 = vunpack.c.l.b16 %v26
    %v63 = vunpack.c.l.b16 %v27
    %v64 = vunpack.c.l.b16 %v28
    %v65 = vpack.c.b16 %v50, %v49
    %v66 = vpack.c.b16 %v52, %v51
    %v67 = vpack.c.b16 %v54, %v53
    %v68 = vpack.c.b16 %v56, %v55
    %v69 = vpack.c.b16 %v58, %v57
    %v70 = vpack.c.b16 %v60, %v59
    %v71 = vpack.c.b16 %v62, %v61
    %v72 = vpack.c.b16 %v64, %v63
    %v77 = vunpack.c.l.b16 %v29
    %v78 = vunpack.c.l.b16 %v30
    %v79 = vunpack.c.l.b16 %v31
    %v80 = vunpack.c.l.b16 %v32
    %v81 = vpack.c.b16 %v78, %v77
    %v82 = vpack.c.b16 %v80, %v79
    %vm85 = vcmask 261120
    %v87 = vsel %vm85, %v65, 0
    %v90 = vsel %vm85, %v66, 0
    %v93 = vsel %vm85, %v67, 0
    %v96 = vsel %vm85, %v68, 0
    %v99 = vsel %vm85, %v69, 0
    %v102 = vsel %vm85, %v70, 0
    %v105 = vsel %vm85, %v71, 0
    %v108 = vsel %vm85, %v72, 0
    %110 = vmatprep.subr.bf16.mxu0 0
    %111 = vmatpush1.bf16.msra.mxu0 %v81
    %112 = vmatprep.subr.bf16.mxu0 0
    %113 = vmatpush1.bf16.msra.mxu0 %v82
    %114 = vmatprep.subr.bf16.mxu0 0
    %115 = vmatpush1.bf16.msra.mxu0 0
    %116 = vmatprep.subr.bf16.mxu0 0
    %117 = vmatpush1.bf16.msra.mxu0 0
    %118 = vmatprep.subr.bf16.mxu0 0
    %119 = vmatpush1.bf16.msra.mxu0 0
    %120 = vmatprep.subr.bf16.mxu0 0
    %121 = vmatpush1.bf16.msra.mxu0 0
    %122 = vmatprep.subr.bf16.mxu0 0
    %123 = vmatpush1.bf16.msra.mxu0 0
    %124 = vmatprep.subr.bf16.mxu0 0
    %125 = vmatpush1.bf16.msra.mxu0 0
    %126 = vmatprep.subr.bf16.mxu0 0
    %127 = vmatpush1.bf16.msra.mxu0 0
    %128 = vmatprep.subr.bf16.mxu0 0
    %129 = vmatpush1.bf16.msra.mxu0 0
    %130 = vmatprep.subr.bf16.mxu0 0
    %131 = vmatpush1.bf16.msra.mxu0 0
    %132 = vmatprep.subr.bf16.mxu0 0
    %133 = vmatpush1.bf16.msra.mxu0 0
    %134 = vmatprep.subr.bf16.mxu0 0
    %135 = vmatpush1.bf16.msra.mxu0 0
    %136 = vmatprep.subr.bf16.mxu0 0
    %137 = vmatpush1.bf16.msra.mxu0 0
    %138 = vmatprep.subr.bf16.mxu0 0
    %139 = vmatpush1.bf16.msra.mxu0 0
    %140 = vmatprep.subr.bf16.mxu0 0
    %141 = vmatpush1.bf16.msra.mxu0 0
    %142 = vmatprep.mubr.bf16.mxu0 0
    %143 = vmatmul.mubr.bf16.gmra.mrb[0].mxu0 %v87
    %v144 = vpop.f32.mrb[0].mxu0
    %v145 = vadd.f32 0.0, %v144
    %v146 = vpop.f32.mrb[0].mxu0
    %v147 = vpop.f32.mrb[0].mxu0
    %v148 = vadd.f32 0.0, %v147
    %v149 = vpop.f32.mrb[0].mxu0
    %150 = vmatprep.mubr.bf16.mxu0 0
    %151 = vmatmul.mubr.bf16.gmra.mrb[0].mxu0 %v90
    %v152 = vpop.f32.mrb[0].mxu0
    %v153 = vadd.f32 0.0, %v152
    %v154 = vpop.f32.mrb[0].mxu0
    %v155 = vpop.f32.mrb[0].mxu0
    %v156 = vadd.f32 0.0, %v155
    %v157 = vpop.f32.mrb[0].mxu0
    %158 = vmatprep.mubr.bf16.mxu0 0
    %159 = vmatmul.mubr.bf16.gmra.mrb[0].mxu0 %v93
    %v160 = vpop.f32.mrb[0].mxu0
    %v161 = vadd.f32 0.0, %v160
    %v162 = vpop.f32.mrb[0].mxu0
    %v163 = vpop.f32.mrb[0].mxu0
    %v164 = vadd.f32 0.0, %v163
    %v165 = vpop.f32.mrb[0].mxu0
    %166 = vmatprep.mubr.bf16.mxu0 0
    %167 = vmatmul.mubr.bf16.gmra.mrb[0].mxu0 %v96
    %v168 = vpop.f32.mrb[0].mxu0
    %v169 = vadd.f32 0.0, %v168
    %v170 = vpop.f32.mrb[0].mxu0
    %v171 = vpop.f32.mrb[0].mxu0
    %v172 = vadd.f32 0.0, %v171
    %v173 = vpop.f32.mrb[0].mxu0
    %174 = vmatprep.mubr.bf16.mxu0 0
    %175 = vmatmul.mubr.bf16.gmra.mrb[0].mxu0 %v99
    %v176 = vpop.f32.mrb[0].mxu0
    %v177 = vadd.f32 0.0, %v176
    %v178 = vpop.f32.mrb[0].mxu0
    %v179 = vpop.f32.mrb[0].mxu0
    %v180 = vadd.f32 0.0, %v179
    %v181 = vpop.f32.mrb[0].mxu0
    %182 = vmatprep.mubr.bf16.mxu0 0
    %183 = vmatmul.mubr.bf16.gmra.mrb[0].mxu0 %v102
    %v184 = vpop.f32.mrb[0].mxu0
    %v185 = vadd.f32 0.0, %v184
    %v186 = vpop.f32.mrb[0].mxu0
    %v187 = vpop.f32.mrb[0].mxu0
    %v188 = vadd.f32 0.0, %v187
    %v189 = vpop.f32.mrb[0].mxu0
    %190 = vmatprep.mubr.bf16.mxu0 0
    %191 = vmatmul.mubr.bf16.gmra.mrb[0].mxu0 %v105
    %v192 = vpop.f32.mrb[0].mxu0
    %v193 = vadd.f32 0.0, %v192
    %v194 = vpop.f32.mrb[0].mxu0
    %v195 = vpop.f32.mrb[0].mxu0
    %v196 = vadd.f32 0.0, %v195
    %v197 = vpop.f32.mrb[0].mxu0
    %198 = vmatprep.mubr.bf16.mxu0 0
    %199 = vmatmul.mubr.bf16.gmra.mrb[0].mxu0 %v108
    %v200 = vpop.f32.mrb[0].mxu0
    %v201 = vadd.f32 0.0, %v200
    %v202 = vpop.f32.mrb[0].mxu0
    %v203 = vpop.f32.mrb[0].mxu0
    %v204 = vadd.f32 0.0, %v203
    %v205 = vpop.f32.mrb[0].mxu0
    %206 = vdwg.mxu0
    %v207 = vpack.c.bf16 %v148, %v145
    %v208 = vpack.c.bf16 %v156, %v153
    %v209 = vpack.c.bf16 %v164, %v161
    %v210 = vpack.c.bf16 %v172, %v169
    %v211 = vpack.c.bf16 %v180, %v177
    %v212 = vpack.c.bf16 %v188, %v185
    %v213 = vpack.c.bf16 %v196, %v193
    %v214 = vpack.c.bf16 %v204, %v201
    %v223 = vunpack.c.l.b16 %v207
    %v224 = vunpack.c.h.b16 %v207
    %v225 = vunpack.c.l.b16 %v208
    %v226 = vunpack.c.h.b16 %v208
    %v227 = vunpack.c.l.b16 %v209
    %v228 = vunpack.c.h.b16 %v209
    %v229 = vunpack.c.l.b16 %v210
    %v230 = vunpack.c.h.b16 %v210
    %v231 = vunpack.c.l.b16 %v211
    %v232 = vunpack.c.h.b16 %v211
    %v233 = vunpack.c.l.b16 %v212
    %v234 = vunpack.c.h.b16 %v212
    %v235 = vunpack.c.l.b16 %v213
    %v236 = vunpack.c.h.b16 %v213
    %v237 = vunpack.c.l.b16 %v214
    %v238 = vunpack.c.h.b16 %v214
    %v239 = vpack.c.b16 %v223, %v223
    %v240 = vpack.c.b16 %v224, %v224
    %v241 = vpack.c.b16 %v225, %v225
    %v242 = vpack.c.b16 %v226, %v226
    %v243 = vpack.c.b16 %v227, %v227
    %v244 = vpack.c.b16 %v228, %v228
    %v245 = vpack.c.b16 %v229, %v229
    %v246 = vpack.c.b16 %v230, %v230
    %v247 = vpack.c.b16 %v231, %v231
    %v248 = vpack.c.b16 %v232, %v232
    %v249 = vpack.c.b16 %v233, %v233
    %v250 = vpack.c.b16 %v234, %v234
    %v251 = vpack.c.b16 %v235, %v235
    %v252 = vpack.c.b16 %v236, %v236
    %v253 = vpack.c.b16 %v237, %v237
    %v254 = vpack.c.b16 %v238, %v238
    %271 = vst [vmem:[#allocation2] sm:$0xf] %v239
    %272 = vst [vmem:[#allocation2 + $0x4] sm:$0xf] %v240
    %273 = vst [vmem:[#allocation2 + $0x8] sm:$0xf] %v241
    %274 = vst [vmem:[#allocation2 + $0xc] sm:$0xf] %v242
    %275 = vst [vmem:[#allocation2 + $0x10] sm:$0xf] %v243
    %276 = vst [vmem:[#allocation2 + $0x14] sm:$0xf] %v244
    %277 = vst [vmem:[#allocation2 + $0x18] sm:$0xf] %v245
    %278 = vst [vmem:[#allocation2 + $0x1c] sm:$0xf] %v246
    %279 = vst [vmem:[#allocation2 + $0x20] sm:$0xf] %v247
    %280 = vst [vmem:[#allocation2 + $0x24] sm:$0xf] %v248
    %281 = vst [vmem:[#allocation2 + $0x28] sm:$0xf] %v249
    %282 = vst [vmem:[#allocation2 + $0x2c] sm:$0xf] %v250
    %283 = vst [vmem:[#allocation2 + $0x30] sm:$0xf] %v251
    %284 = vst [vmem:[#allocation2 + $0x34] sm:$0xf] %v252
    %285 = vst [vmem:[#allocation2 + $0x38] sm:$0xf] %v253
    %286 = vst [vmem:[#allocation2 + $0x3c] sm:$0xf] %v254
    // Predicated region
    $region10: #{tpu_custom_call.1} parent=1 // pred_check
      _
    $region11: #{tpu_custom_call.1} parent=1 // pred_check_branch
      %288 = sbr.rel (0) target = $region13
    $region12: #{tpu_custom_call.1} parent=1 // pred_region
      %s290 = ssub.s32 1024, 1024
      %291 = vsyncadd [#allocation3], %s290
      %s292 = sshll.u32 [#allocation2], 4
      %s293 = int_to_ptr.vmem [resolvable:$true] %s292
      %298 = dma.vmem_to_hbm [thread:$0]  %s293, 1024, %s2, [#allocation3], 64, 64, 4
    $region13: #{tpu_custom_call.1} parent=1 // pred_fallthru
      _
    // Predicated region
    $region14: #{tpu_custom_call.1} parent=1 // pred_check
      _
    $region15: #{tpu_custom_call.1} parent=1 // pred_check_branch
      %300 = sbr.rel (0) target = $region17
    $region16: #{tpu_custom_call.1} parent=1 // pred_region
      %301 = dma.done [#allocation3], 1024
    $region17: #{tpu_custom_call.1} parent=1 // pred_fallthru
      _
    %302 = vsyncpa [#allocation3], 1

</llo_original>
